<compile_context>
chip_gen: v6e
topology: v6e:2x2x1
jax: 0.10.0
libtpu: 0.0.40
codegen_flags: <defaults>
</compile_context>

<pallas_src>
import jax
import jax.numpy as jnp
from jax.experimental import pallas as pl
from jax.experimental.pallas import tpu as pltpu


def _fused_kernel(x1_ref, x2_ref, w1_ref, b1_ref, v1_ref,
                  w2_ref, b2_ref, v2_ref, c_ref, out_ref):
    # x1_ref/x2_ref: [TB, 10]   w*_ref: [10, 10]   b*_ref: [1, 10]
    # v*_ref: [10, 1]           c_ref: [1, 1]      out_ref: [TB, 1]
    h1 = jnp.maximum(
        jnp.dot(x1_ref[...], w1_ref[...], preferred_element_type=jnp.float32)
        + b1_ref[...], 0.0)
    h2 = jnp.maximum(
        jnp.dot(x2_ref[...], w2_ref[...], preferred_element_type=jnp.float32)
        + b2_ref[...], 0.0)
    y = (jnp.dot(h1, v1_ref[...], preferred_element_type=jnp.float32)
         + jnp.dot(h2, v2_ref[...], preferred_element_type=jnp.float32)
         + c_ref[...])
    out_ref[...] = y.astype(out_ref.dtype)


def testmodel_forward(x1, x2, params, *, block_b=1024):
    """x1, x2: [B, 10] float32. Returns [B, 1] float32."""
    B, F = x1.shape
    f32 = jnp.float32

    # ---- exact weight folding (model is affine after the ReLUs) ----
    wo, bo = params["wo"], params["bo"]                         # [4,1], [1,1]
    v1 = (params["w1b"] @ wo[0:2]).astype(f32)                  # [10,1]
    v2 = (params["w2b"] @ wo[2:4]).astype(f32)                  # [10,1]
    c = (params["b1b"] @ wo[0:2] + params["b2b"] @ wo[2:4] + bo).astype(f32)  # [1,1]

    w1, b1 = params["w1a"].astype(f32), params["b1a"].astype(f32)
    w2, b2 = params["w2a"].astype(f32), params["b2a"].astype(f32)

    # ---- batch tiling (pad only when the tile does not divide B) ----
    tb = min(block_b, B)
    pad = (-B) % tb
    if pad:
        x1 = jnp.pad(x1, ((0, pad), (0, 0)))
        x2 = jnp.pad(x2, ((0, pad), (0, 0)))
    Bp = B + pad
    grid = (Bp // tb,)

    out = pl.pallas_call(
        _fused_kernel,
        out_shape=jax.ShapeDtypeStruct((Bp, 1), f32),
        grid=grid,
        in_specs=[
            # batch-tiled inputs (two streams -> no wrapper-side concat pass)
            pl.BlockSpec((tb, F), lambda i: (i, 0)),
            pl.BlockSpec((tb, F), lambda i: (i, 0)),
            # weights/biases: full-array blocks with constant index_map ->
            # VMEM-resident across all batch tiles.
            pl.BlockSpec(w1.shape, lambda i: (0, 0)),
            pl.BlockSpec(b1.shape, lambda i: (0, 0)),
            pl.BlockSpec(v1.shape, lambda i: (0, 0)),
            pl.BlockSpec(w2.shape, lambda i: (0, 0)),
            pl.BlockSpec(b2.shape, lambda i: (0, 0)),
            pl.BlockSpec(v2.shape, lambda i: (0, 0)),
            pl.BlockSpec(c.shape, lambda i: (0, 0)),
        ],
        out_specs=pl.BlockSpec((tb, 1), lambda i: (i, 0)),
        compiler_params=pltpu.CompilerParams(
            dimension_semantics=("parallel",)),  # megacore sharding on v7x
    )(x1, x2, w1, b1, v1, w2, b2, v2, c)

    return out[:B]


def init_params(key):
    """Deterministic parameter init matching the module's shapes.
    Weights are stored [in_features, out_features]."""
    ks = jax.random.split(key, 10)
    scale = 0.1
    return {
        # seq1
        "w1a": scale * jax.random.normal(ks[0], (10, 10), jnp.float32),
        "b1a": scale * jax.random.normal(ks[1], (1, 10), jnp.float32),
        "w1b": scale * jax.random.normal(ks[2], (10, 2), jnp.float32),
        "b1b": scale * jax.random.normal(ks[3], (1, 2), jnp.float32),
        # seq2
        "w2a": scale * jax.random.normal(ks[4], (10, 10), jnp.float32),
        "b2a": scale * jax.random.normal(ks[5], (1, 10), jnp.float32),
        "w2b": scale * jax.random.normal(ks[6], (10, 2), jnp.float32),
        "b2b": scale * jax.random.normal(ks[7], (1, 2), jnp.float32),
        # out_fc
        "wo": scale * jax.random.normal(ks[8], (4, 1), jnp.float32),
        "bo": scale * jax.random.normal(ks[9], (1, 1), jnp.float32),
    }


def _reference(x1, x2, p):
    """Unfused JAX reference reproducing the original module math."""
    h1 = jnp.maximum(x1 @ p["w1a"] + p["b1a"], 0.0)
    y1 = h1 @ p["w1b"] + p["b1b"]
    h2 = jnp.maximum(x2 @ p["w2a"] + p["b2a"], 0.0)
    y2 = h2 @ p["w2b"] + p["b2b"]
    return jnp.concatenate([y1, y2], axis=1) @ p["wo"] + p["bo"]


if __name__ == "__main__":
    key = jax.random.PRNGKey(0)
    k_x1, k_x2, k_p = jax.random.split(key, 3)
    params = init_params(k_p)

    # Small-shape check (single tile).
    B = 8
    x1 = jax.random.normal(k_x1, (B, 10), jnp.float32)
    x2 = jax.random.normal(k_x2, (B, 10), jnp.float32)
    ref = _reference(x1, x2, params)
    out = jax.block_until_ready(testmodel_forward(x1, x2, params))
    assert out.shape == (B, 1)
    assert jnp.allclose(out, ref, atol=1e-5, rtol=1e-5), "mismatch vs reference (B=8)"

    # Multi-tile + ragged-batch check (grid > 1, padded last tile).
    B2 = 300
    x1b = jax.random.normal(jax.random.PRNGKey(1), (B2, 10), jnp.float32)
    x2b = jax.random.normal(jax.random.PRNGKey(2), (B2, 10), jnp.float32)
    ref2 = _reference(x1b, x2b, params)
    out2 = jax.block_until_ready(testmodel_forward(x1b, x2b, params, block_b=128))
    assert out2.shape == (B2, 1)
    assert jnp.allclose(out2, ref2, atol=1e-5, rtol=1e-5), "mismatch vs reference (B=300)"

    print("KERNEL_OK")
</pallas_src>

<mosaic_0001>
module attributes {stable_mosaic.version = 11 : i64} {
  func.func @_fused_kernel(%arg0: i32, %arg1: memref<8x10xf32, #tpu.memory_space<vmem>>, %arg2: memref<8x10xf32, #tpu.memory_space<vmem>>, %arg3: memref<10x10xf32, #tpu.memory_space<vmem>>, %arg4: memref<1x10xf32, #tpu.memory_space<vmem>>, %arg5: memref<10x1xf32, #tpu.memory_space<vmem>>, %arg6: memref<10x10xf32, #tpu.memory_space<vmem>>, %arg7: memref<1x10xf32, #tpu.memory_space<vmem>>, %arg8: memref<10x1xf32, #tpu.memory_space<vmem>>, %arg9: memref<1x1xf32, #tpu.memory_space<vmem>>, %arg10: memref<8x1xf32, #tpu.memory_space<vmem>>) attributes {dimension_semantics = [#tpu.dimension_semantics<parallel>], iteration_bounds = array<i64: 1>, scalar_prefetch = 0 : i64, scratch_operands = 0 : i64, tpu.core_type = #tpu.core_type<tc>, window_params = [{transform_indices = @transform_0, window_bounds = array<i64: 8, 10>}, {transform_indices = @transform_1, window_bounds = array<i64: 8, 10>}, {pipeline_mode = #tpu.pipeline_mode<synchronous>, transform_indices = @transform_2, window_bounds = array<i64: 10, 10>}, {pipeline_mode = #tpu.pipeline_mode<synchronous>, transform_indices = @transform_3, window_bounds = array<i64: 1, 10>}, {pipeline_mode = #tpu.pipeline_mode<synchronous>, transform_indices = @transform_4, window_bounds = array<i64: 10, 1>}, {pipeline_mode = #tpu.pipeline_mode<synchronous>, transform_indices = @transform_5, window_bounds = array<i64: 10, 10>}, {pipeline_mode = #tpu.pipeline_mode<synchronous>, transform_indices = @transform_6, window_bounds = array<i64: 1, 10>}, {pipeline_mode = #tpu.pipeline_mode<synchronous>, transform_indices = @transform_7, window_bounds = array<i64: 10, 1>}, {pipeline_mode = #tpu.pipeline_mode<synchronous>, transform_indices = @transform_8, window_bounds = array<i64: 1, 1>}, {transform_indices = @transform_9, window_bounds = array<i64: 8, 1>}]} {
    %c0 = arith.constant 0 : index
    %c0_0 = arith.constant 0 : index
    %0 = vector.load %arg1[%c0, %c0_0] : memref<8x10xf32, #tpu.memory_space<vmem>>, vector<8x10xf32>
    %c0_1 = arith.constant 0 : index
    %c0_2 = arith.constant 0 : index
    %1 = vector.load %arg3[%c0_1, %c0_2] : memref<10x10xf32, #tpu.memory_space<vmem>>, vector<10x10xf32>
    %cst = arith.constant dense<0.000000e+00> : vector<8x10xf32>
    %2 = tpu.matmul %0, %1, %cst {dimension_numbers = #tpu.dot_dimension_numbers<[1], [0], [0], [1], [0, 0, 1, 1], [], []>} : vector<8x10xf32>, vector<10x10xf32>, vector<8x10xf32> -> vector<8x10xf32>
    %c0_3 = arith.constant 0 : index
    %c0_4 = arith.constant 0 : index
    %3 = vector.load %arg4[%c0_3, %c0_4] : memref<1x10xf32, #tpu.memory_space<vmem>>, vector<1x10xf32>
    %4 = vector.broadcast %3 : vector<1x10xf32> to vector<8x10xf32>
    %5 = arith.addf %2, %4 : vector<8x10xf32>
    %cst_5 = arith.constant 0.000000e+00 : f32
    %6 = vector.broadcast %cst_5 : f32 to vector<8x10xf32>
    %7 = arith.maximumf %5, %6 : vector<8x10xf32>
    %c0_6 = arith.constant 0 : index
    %c0_7 = arith.constant 0 : index
    %8 = vector.load %arg2[%c0_6, %c0_7] : memref<8x10xf32, #tpu.memory_space<vmem>>, vector<8x10xf32>
    %c0_8 = arith.constant 0 : index
    %c0_9 = arith.constant 0 : index
    %9 = vector.load %arg6[%c0_8, %c0_9] : memref<10x10xf32, #tpu.memory_space<vmem>>, vector<10x10xf32>
    %cst_10 = arith.constant dense<0.000000e+00> : vector<8x10xf32>
    %10 = tpu.matmul %8, %9, %cst_10 {dimension_numbers = #tpu.dot_dimension_numbers<[1], [0], [0], [1], [0, 0, 1, 1], [], []>} : vector<8x10xf32>, vector<10x10xf32>, vector<8x10xf32> -> vector<8x10xf32>
    %c0_11 = arith.constant 0 : index
    %c0_12 = arith.constant 0 : index
    %11 = vector.load %arg7[%c0_11, %c0_12] : memref<1x10xf32, #tpu.memory_space<vmem>>, vector<1x10xf32>
    %12 = vector.broadcast %11 : vector<1x10xf32> to vector<8x10xf32>
    %13 = arith.addf %10, %12 : vector<8x10xf32>
    %cst_13 = arith.constant 0.000000e+00 : f32
    %14 = vector.broadcast %cst_13 : f32 to vector<8x10xf32>
    %15 = arith.maximumf %13, %14 : vector<8x10xf32>
    %c0_14 = arith.constant 0 : index
    %c0_15 = arith.constant 0 : index
    %16 = vector.load %arg5[%c0_14, %c0_15] : memref<10x1xf32, #tpu.memory_space<vmem>>, vector<10x1xf32>
    %cst_16 = arith.constant dense<0.000000e+00> : vector<8x1xf32>
    %17 = tpu.matmul %7, %16, %cst_16 {dimension_numbers = #tpu.dot_dimension_numbers<[1], [0], [0], [1], [0, 0, 1, 1], [], []>} : vector<8x10xf32>, vector<10x1xf32>, vector<8x1xf32> -> vector<8x1xf32>
    %c0_17 = arith.constant 0 : index
    %c0_18 = arith.constant 0 : index
    %18 = vector.load %arg8[%c0_17, %c0_18] : memref<10x1xf32, #tpu.memory_space<vmem>>, vector<10x1xf32>
    %cst_19 = arith.constant dense<0.000000e+00> : vector<8x1xf32>
    %19 = tpu.matmul %15, %18, %cst_19 {dimension_numbers = #tpu.dot_dimension_numbers<[1], [0], [0], [1], [0, 0, 1, 1], [], []>} : vector<8x10xf32>, vector<10x1xf32>, vector<8x1xf32> -> vector<8x1xf32>
    %20 = arith.addf %17, %19 : vector<8x1xf32>
    %c0_20 = arith.constant 0 : index
    %c0_21 = arith.constant 0 : index
    %21 = vector.load %arg9[%c0_20, %c0_21] : memref<1x1xf32, #tpu.memory_space<vmem>>, vector<1x1xf32>
    %22 = vector.broadcast %21 : vector<1x1xf32> to vector<8x1xf32>
    %23 = arith.addf %20, %22 : vector<8x1xf32>
    %c0_22 = arith.constant 0 : index
    %c0_23 = arith.constant 0 : index
    %24 = vector.load %arg10[%c0_22, %c0_23] : memref<8x1xf32, #tpu.memory_space<vmem>>, vector<8x1xf32>
    tpu.vector_store %arg10[%c0_22, %c0_23], %23 {strides = array<i32>} : memref<8x1xf32, #tpu.memory_space<vmem>>, vector<8x1xf32>,
    return
  }
  func.func @transform_0(%arg0: i32) -> (i32, i32) {
    %c0_i32 = arith.constant 0 : i32
    %c0_i32_0 = arith.constant 0 : i32
    return %arg0, %c0_i32 : i32, i32
  }
  func.func @transform_1(%arg0: i32) -> (i32, i32) {
    %c0_i32 = arith.constant 0 : i32
    %c0_i32_0 = arith.constant 0 : i32
    return %arg0, %c0_i32 : i32, i32
  }
  func.func @transform_2(%arg0: i32) -> (i32, i32) {
    %c0_i32 = arith.constant 0 : i32
    %c0_i32_0 = arith.constant 0 : i32
    %c0_i32_1 = arith.constant 0 : i32
    return %c0_i32, %c0_i32_0 : i32, i32
  }
  func.func @transform_3(%arg0: i32) -> (i32, i32) {
    %c0_i32 = arith.constant 0 : i32
    %c0_i32_0 = arith.constant 0 : i32
    %c0_i32_1 = arith.constant 0 : i32
    return %c0_i32, %c0_i32_0 : i32, i32
  }
  func.func @transform_4(%arg0: i32) -> (i32, i32) {
    %c0_i32 = arith.constant 0 : i32
    %c0_i32_0 = arith.constant 0 : i32
    %c0_i32_1 = arith.constant 0 : i32
    return %c0_i32, %c0_i32_0 : i32, i32
  }
  func.func @transform_5(%arg0: i32) -> (i32, i32) {
    %c0_i32 = arith.constant 0 : i32
    %c0_i32_0 = arith.constant 0 : i32
    %c0_i32_1 = arith.constant 0 : i32
    return %c0_i32, %c0_i32_0 : i32, i32
  }
  func.func @transform_6(%arg0: i32) -> (i32, i32) {
    %c0_i32 = arith.constant 0 : i32
    %c0_i32_0 = arith.constant 0 : i32
    %c0_i32_1 = arith.constant 0 : i32
    return %c0_i32, %c0_i32_0 : i32, i32
  }
  func.func @transform_7(%arg0: i32) -> (i32, i32) {
    %c0_i32 = arith.constant 0 : i32
    %c0_i32_0 = arith.constant 0 : i32
    %c0_i32_1 = arith.constant 0 : i32
    return %c0_i32, %c0_i32_0 : i32, i32
  }
  func.func @transform_8(%arg0: i32) -> (i32, i32) {
    %c0_i32 = arith.constant 0 : i32
    %c0_i32_0 = arith.constant 0 : i32
    %c0_i32_1 = arith.constant 0 : i32
    return %c0_i32, %c0_i32_0 : i32, i32
  }
  func.func @transform_9(%arg0: i32) -> (i32, i32) {
    %c0_i32 = arith.constant 0 : i32
    %c0_i32_0 = arith.constant 0 : i32
    return %arg0, %c0_i32 : i32, i32
  }
}

</mosaic_0001>

<llo_original>
// kernel: tpu_custom_call.1
$region0: #{tpu_custom_call.1}
  #allocation0 [shape = 'u32[]', space=smem, size = 0x4, offset = 0x4, fixed_abs, tag = 'smem constant byte address 0x4 - core index']
  #allocation1 [shape = 'u32[144,128]{1,0:T(1,128)}', space=vmem, size = 0x12000, scoped, tag = 'internal scratch']
  #allocation2 [shape = 'f32[1,1]{1,0:T(1,128)S(1)}', space=vmem, size = 0x200, scoped, tag = 'scoped memory for tpu_custom_call.1']
  %s0 = inlined_call_operand.hbm [shape: f32[8,10], index: 0, kind: input, shape index: {}]
  %s1 = inlined_call_operand.hbm [shape: f32[8,10], index: 1, kind: input, shape index: {}]
  %s2 = inlined_call_operand.vmem [shape: f32[10,10], index: 2, kind: input, shape index: {}]
  %s3 = inlined_call_operand.vmem [shape: f32[1,10], index: 3, kind: input, shape index: {}]
  %s4 = inlined_call_operand.vmem [shape: f32[10,1], index: 4, kind: input, shape index: {}]
  %s5 = inlined_call_operand.vmem [shape: f32[10,10], index: 5, kind: input, shape index: {}]
  %s6 = inlined_call_operand.vmem [shape: f32[1,10], index: 6, kind: input, shape index: {}]
  %s7 = inlined_call_operand.vmem [shape: f32[10,1], index: 7, kind: input, shape index: {}]
  %s8 = inlined_call_operand.<no memory space> [shape: f32[1,1], index: 8, kind: input, shape index: {}]
  %s9 = inlined_call_operand.vmem [shape: f32[8,1], index: 9, kind: output, shape index: {}]
  %s10 = sld [smem:[#allocation0]]
  $region54: #{tpu_custom_call.1} parent=0
    _
  %s12 = ssub.s32 1, %s10
  %s13 = scalar_select 0, %s12, %s10
  %v14 = vstv %s8
  %15 = vst [vmem:[#allocation2] sm:$0x1] %v14
  $region1: #{tpu_custom_call.1} parent=0
    #allocation3 [shape = 'u8[4096]{0}', space=vmem, size = 0x1000, scoped, tag = 'input window, operand 0, single buffered']
    #allocation4 [shape = 's32[1]{0}', space=sflag, size = 0x4, scoped, tag = 'scoped memory for tpu_custom_call.1']
    #allocation5 [shape = 'u8[4096]{0}', space=vmem, size = 0x1000, scoped, tag = 'input window, operand 1, single buffered']
    #allocation6 [shape = 's32[1]{0}', space=sflag, size = 0x4, scoped, tag = 'scoped memory for tpu_custom_call.1']
    %16 = vsyncpa [#allocation4], 0
    %17 = vsyncpa [#allocation6], 0
    // Predicated region
    $region2: #{tpu_custom_call.1} parent=1 // pred_check
      _
    $region3: #{tpu_custom_call.1} parent=1 // pred_check_branch
      %19 = sbr.rel (0) target = $region5
    $region4: #{tpu_custom_call.1} parent=1 // pred_region
      %s21 = ssub.s32 128, 128
      %22 = vsyncadd [#allocation4], %s21
      %s24 = sshll.u32 [#allocation3], 4
      %s25 = int_to_ptr.vmem [resolvable:$true] %s24
      %27 = dma.hbm_to_vmem [thread:$0]  %s0, 128, %s25, [#allocation4]
    $region5: #{tpu_custom_call.1} parent=1 // pred_fallthru
      _
    // Predicated region
    $region6: #{tpu_custom_call.1} parent=1 // pred_check
      _
    $region7: #{tpu_custom_call.1} parent=1 // pred_check_branch
      %29 = sbr.rel (0) target = $region9
    $region8: #{tpu_custom_call.1} parent=1 // pred_region
      %s31 = ssub.s32 128, 128
      %32 = vsyncadd [#allocation6], %s31
      %s34 = sshll.u32 [#allocation5], 4
      %s35 = int_to_ptr.vmem [resolvable:$true] %s34
      %37 = dma.hbm_to_vmem [thread:$0]  %s1, 128, %s35, [#allocation6]
    $region9: #{tpu_custom_call.1} parent=1 // pred_fallthru
      _
    // Predicated region
    $region10: #{tpu_custom_call.1} parent=1 // pred_check
      _
    $region11: #{tpu_custom_call.1} parent=1 // pred_check_branch
      %39 = sbr.rel (0) target = $region13
    $region12: #{tpu_custom_call.1} parent=1 // pred_region
      _
    $region13: #{tpu_custom_call.1} parent=1 // pred_fallthru
      _
    // Predicated region
    $region14: #{tpu_custom_call.1} parent=1 // pred_check
      _
    $region15: #{tpu_custom_call.1} parent=1 // pred_check_branch
      %41 = sbr.rel (0) target = $region17
    $region16: #{tpu_custom_call.1} parent=1 // pred_region
      _
    $region17: #{tpu_custom_call.1} parent=1 // pred_fallthru
      _
    // Predicated region
    $region18: #{tpu_custom_call.1} parent=1 // pred_check
      _
    $region19: #{tpu_custom_call.1} parent=1 // pred_check_branch
      %43 = sbr.rel (0) target = $region21
    $region20: #{tpu_custom_call.1} parent=1 // pred_region
      _
    $region21: #{tpu_custom_call.1} parent=1 // pred_fallthru
      _
    // Predicated region
    $region22: #{tpu_custom_call.1} parent=1 // pred_check
      _
    $region23: #{tpu_custom_call.1} parent=1 // pred_check_branch
      %45 = sbr.rel (0) target = $region25
    $region24: #{tpu_custom_call.1} parent=1 // pred_region
      _
    $region25: #{tpu_custom_call.1} parent=1 // pred_fallthru
      _
    // Predicated region
    $region26: #{tpu_custom_call.1} parent=1 // pred_check
      _
    $region27: #{tpu_custom_call.1} parent=1 // pred_check_branch
      %47 = sbr.rel (0) target = $region29
    $region28: #{tpu_custom_call.1} parent=1 // pred_region
      _
    $region29: #{tpu_custom_call.1} parent=1 // pred_fallthru
      _
    // Predicated region
    $region30: #{tpu_custom_call.1} parent=1 // pred_check
      _
    $region31: #{tpu_custom_call.1} parent=1 // pred_check_branch
      %49 = sbr.rel (0) target = $region33
    $region32: #{tpu_custom_call.1} parent=1 // pred_region
      _
    $region33: #{tpu_custom_call.1} parent=1 // pred_fallthru
      _
    // Predicated region
    $region34: #{tpu_custom_call.1} parent=1 // pred_check
      _
    $region35: #{tpu_custom_call.1} parent=1 // pred_check_branch
      %51 = sbr.rel (0) target = $region37
    $region36: #{tpu_custom_call.1} parent=1 // pred_region
      _
    $region37: #{tpu_custom_call.1} parent=1 // pred_fallthru
      _
    // Predicated region
    $region38: #{tpu_custom_call.1} parent=1 // pred_check
      _
    $region39: #{tpu_custom_call.1} parent=1 // pred_check_branch
      %53 = sbr.rel (0) target = $region41
    $region40: #{tpu_custom_call.1} parent=1 // pred_region
      %54 = dma.done [#allocation4], 128
    $region41: #{tpu_custom_call.1} parent=1 // pred_fallthru
      _
    // Predicated region
    $region42: #{tpu_custom_call.1} parent=1 // pred_check
      _
    $region43: #{tpu_custom_call.1} parent=1 // pred_check_branch
      %56 = sbr.rel (0) target = $region45
    $region44: #{tpu_custom_call.1} parent=1 // pred_region
      %57 = dma.done [#allocation6], 128
    $region45: #{tpu_custom_call.1} parent=1 // pred_fallthru
      _
    %v58 = vld [vmem:[#allocation3] sm:$0xff]
    %v59 = vld [vmem:[%s2] sm:$0xff]
    %v60 = vld [vmem:[%s2 + $0x8] sm:$0x3]
    %v61 = vld [vmem:[%s3] sm:$0x1]
    %v63 = vlaneseq
    %v64 = vshrl.u32 %v63, 7
    %v65 = vsub.s32 0, %v64
    %v66 = vrot.slane %v61, %v65
    %vm68 = vcmask 80896
    %v70 = vsel %vm68, %v58, 0
    %vm72 = vcmask 1041408
    %v74 = vsel %vm72, %v60, 0
    %76 = vmatprep.subr.mxu0 0.0
    %77 = vmatpush1.msra.mxu0 0.0
    %78 = vmatprep.subr.mxu0 0.0
    %79 = vmatpush1.msra.mxu0 0.0
    %80 = vmatprep.subr.mxu0 0.0
    %81 = vmatpush1.msra.mxu0 0.0
    %82 = vmatprep.subr.mxu0 0.0
    %83 = vmatpush1.msra.mxu0 0.0
    %84 = vmatprep.subr.mxu0 0.0
    %85 = vmatpush1.msra.mxu0 0.0
    %86 = vmatprep.subr.mxu0 0.0
    %87 = vmatpush1.msra.mxu0 0.0
    %88 = vmatprep.subr.mxu0 0.0
    %89 = vmatpush1.msra.mxu0 0.0
    %90 = vmatprep.subr.mxu0 0.0
    %91 = vmatpush1.msra.mxu0 0.0
    %92 = vmatprep.subr.mxu0 0.0
    %93 = vmatpush1.msra.mxu0 0.0
    %94 = vmatprep.subr.mxu0 0.0
    %95 = vmatpush1.msra.mxu0 0.0
    %96 = vmatprep.subr.mxu0 0.0
    %97 = vmatpush1.msra.mxu0 0.0
    %98 = vmatprep.subr.mxu0 0.0
    %99 = vmatpush1.msra.mxu0 0.0
    %100 = vmatprep.subr.mxu0 0.0
    %101 = vmatpush1.msra.mxu0 0.0
    %102 = vmatprep.subr.mxu0 0.0
    %103 = vmatpush1.msra.mxu0 0.0
    %104 = vmatprep.subr.mxu0 0.0
    %105 = vmatpush1.msra.mxu0 %v74
    %106 = vmatprep.subr.mxu0 0.0
    %107 = vmatpush1.msra.mxu0 %v59
    %108 = vmatprep.subr.mxu0 0.0
    %109 = vmatpush2.msra.mxu0 0.0
    %110 = vmatprep.subr.mxu0 0.0
    %111 = vmatpush2.msra.mxu0 0.0
    %112 = vmatprep.subr.mxu0 0.0
    %113 = vmatpush2.msra.mxu0 0.0
    %114 = vmatprep.subr.mxu0 0.0
    %115 = vmatpush2.msra.mxu0 0.0
    %116 = vmatprep.subr.mxu0 0.0
    %117 = vmatpush2.msra.mxu0 0.0
    %118 = vmatprep.subr.mxu0 0.0
    %119 = vmatpush2.msra.mxu0 0.0
    %120 = vmatprep.subr.mxu0 0.0
    %121 = vmatpush2.msra.mxu0 0.0
    %122 = vmatprep.subr.mxu0 0.0
    %123 = vmatpush2.msra.mxu0 0.0
    %124 = vmatprep.subr.mxu0 0.0
    %125 = vmatpush2.msra.mxu0 0.0
    %126 = vmatprep.subr.mxu0 0.0
    %127 = vmatpush2.msra.mxu0 0.0
    %128 = vmatprep.subr.mxu0 0.0
    %129 = vmatpush2.msra.mxu0 0.0
    %130 = vmatprep.subr.mxu0 0.0
    %131 = vmatpush2.msra.mxu0 0.0
    %132 = vmatprep.subr.mxu0 0.0
    %133 = vmatpush2.msra.mxu0 0.0
    %134 = vmatprep.subr.mxu0 0.0
    %135 = vmatpush2.msra.mxu0 0.0
    %136 = vmatprep.subr.mxu0 0.0
    %137 = vmatpush2.msra.mxu0 0.0
    %138 = vmatprep.subr.mxu0 0.0
    %139 = vmatpush2.msra.mxu0 0.0
    %140 = vmatprep.mubr.f32.mxu0 0.0
    %141 = vmatmul.mubr.f32.gmra.mxu0 %v70
    %v142 = vpop.f32.mrf.mxu0
    %v143 = vadd.f32 %v66, %v142
    %v144 = vpop.f32.mrf.mxu0
    %145 = vdwg.mxu0
    %v146 = vmax.f32 %v143, 0.0
    %v147 = vld [vmem:[#allocation5] sm:$0xff]
    %v148 = vld [vmem:[%s5] sm:$0xff]
    %v149 = vld [vmem:[%s5 + $0x8] sm:$0x3]
    %v150 = vld [vmem:[%s6] sm:$0x1]
    %v152 = vlaneseq
    %v153 = vshrl.u32 %v152, 7
    %v154 = vsub.s32 0, %v153
    %v155 = vrot.slane %v150, %v154
    %v158 = vsel %vm68, %v147, 0
    %v161 = vsel %vm72, %v149, 0
    %163 = vmatprep.subr.mxu0 0.0
    %164 = vmatpush1.msra.mxu0 0.0
    %165 = vmatprep.subr.mxu0 0.0
    %166 = vmatpush1.msra.mxu0 0.0
    %167 = vmatprep.subr.mxu0 0.0
    %168 = vmatpush1.msra.mxu0 0.0
    %169 = vmatprep.subr.mxu0 0.0
    %170 = vmatpush1.msra.mxu0 0.0
    %171 = vmatprep.subr.mxu0 0.0
    %172 = vmatpush1.msra.mxu0 0.0
    %173 = vmatprep.subr.mxu0 0.0
    %174 = vmatpush1.msra.mxu0 0.0
    %175 = vmatprep.subr.mxu0 0.0
    %176 = vmatpush1.msra.mxu0 0.0
    %177 = vmatprep.subr.mxu0 0.0
    %178 = vmatpush1.msra.mxu0 0.0
    %179 = vmatprep.subr.mxu0 0.0
    %180 = vmatpush1.msra.mxu0 0.0
    %181 = vmatprep.subr.mxu0 0.0
    %182 = vmatpush1.msra.mxu0 0.0
    %183 = vmatprep.subr.mxu0 0.0
    %184 = vmatpush1.msra.mxu0 0.0
    %185 = vmatprep.subr.mxu0 0.0
    %186 = vmatpush1.msra.mxu0 0.0
    %187 = vmatprep.subr.mxu0 0.0
    %188 = vmatpush1.msra.mxu0 0.0
    %189 = vmatprep.subr.mxu0 0.0
    %190 = vmatpush1.msra.mxu0 0.0
    %191 = vmatprep.subr.mxu0 0.0
    %192 = vmatpush1.msra.mxu0 %v161
    %193 = vmatprep.subr.mxu0 0.0
    %194 = vmatpush1.msra.mxu0 %v148
    %195 = vmatprep.subr.mxu0 0.0
    %196 = vmatpush2.msra.mxu0 0.0
    %197 = vmatprep.subr.mxu0 0.0
    %198 = vmatpush2.msra.mxu0 0.0
    %199 = vmatprep.subr.mxu0 0.0
    %200 = vmatpush2.msra.mxu0 0.0
    %201 = vmatprep.subr.mxu0 0.0
    %202 = vmatpush2.msra.mxu0 0.0
    %203 = vmatprep.subr.mxu0 0.0
    %204 = vmatpush2.msra.mxu0 0.0
    %205 = vmatprep.subr.mxu0 0.0
    %206 = vmatpush2.msra.mxu0 0.0
    %207 = vmatprep.subr.mxu0 0.0
    %208 = vmatpush2.msra.mxu0 0.0
    %209 = vmatprep.subr.mxu0 0.0
    %210 = vmatpush2.msra.mxu0 0.0
    %211 = vmatprep.subr.mxu0 0.0
    %212 = vmatpush2.msra.mxu0 0.0
    %213 = vmatprep.subr.mxu0 0.0
    %214 = vmatpush2.msra.mxu0 0.0
    %215 = vmatprep.subr.mxu0 0.0
    %216 = vmatpush2.msra.mxu0 0.0
    %217 = vmatprep.subr.mxu0 0.0
    %218 = vmatpush2.msra.mxu0 0.0
    %219 = vmatprep.subr.mxu0 0.0
    %220 = vmatpush2.msra.mxu0 0.0
    %221 = vmatprep.subr.mxu0 0.0
    %222 = vmatpush2.msra.mxu0 0.0
    %223 = vmatprep.subr.mxu0 0.0
    %224 = vmatpush2.msra.mxu0 0.0
    %225 = vmatprep.subr.mxu0 0.0
    %226 = vmatpush2.msra.mxu0 0.0
    %227 = vmatprep.mubr.f32.mxu0 0.0
    %228 = vmatmul.mubr.f32.gmra.mxu0 %v158
    %v229 = vpop.f32.mrf.mxu0
    %v230 = vadd.f32 %v155, %v229
    %v231 = vpop.f32.mrf.mxu0
    %232 = vdwg.mxu0
    %v233 = vmax.f32 %v230, 0.0
    %v234 = vld [vmem:[%s4] sm:$0xff]
    %v235 = vld [vmem:[%s4 + $0x8] sm:$0x3]
    %v236 = vld [vmem:[%s7] sm:$0xff]
    %v237 = vld [vmem:[%s7 + $0x8] sm:$0x3]
    %v239 = vsel %vm68, %v233, 0
    %v242 = vsel %vm72, %v237, 0
    %244 = vmatprep.subr.mxu0 0.0
    %245 = vmatpush1.msra.mxu0 0.0
    %246 = vmatprep.subr.mxu0 0.0
    %247 = vmatpush1.msra.mxu0 0.0
    %248 = vmatprep.subr.mxu0 0.0
    %249 = vmatpush1.msra.mxu0 0.0
    %250 = vmatprep.subr.mxu0 0.0
    %251 = vmatpush1.msra.mxu0 0.0
    %252 = vmatprep.subr.mxu0 0.0
    %253 = vmatpush1.msra.mxu0 0.0
    %254 = vmatprep.subr.mxu0 0.0
    %255 = vmatpush1.msra.mxu0 0.0
    %256 = vmatprep.subr.mxu0 0.0
    %257 = vmatpush1.msra.mxu0 0.0
    %258 = vmatprep.subr.mxu0 0.0
    %259 = vmatpush1.msra.mxu0 0.0
    %260 = vmatprep.subr.mxu0 0.0
    %261 = vmatpush1.msra.mxu0 0.0
    %262 = vmatprep.subr.mxu0 0.0
    %263 = vmatpush1.msra.mxu0 0.0
    %264 = vmatprep.subr.mxu0 0.0
    %265 = vmatpush1.msra.mxu0 0.0
    %266 = vmatprep.subr.mxu0 0.0
    %267 = vmatpush1.msra.mxu0 0.0
    %268 = vmatprep.subr.mxu0 0.0
    %269 = vmatpush1.msra.mxu0 0.0
    %270 = vmatprep.subr.mxu0 0.0
    %271 = vmatpush1.msra.mxu0 0.0
    %272 = vmatprep.subr.mxu0 0.0
    %273 = vmatpush1.msra.mxu0 %v242
    %274 = vmatprep.subr.mxu0 0.0
    %275 = vmatpush1.msra.mxu0 %v236
    %276 = vmatprep.subr.mxu0 0.0
    %277 = vmatpush2.msra.mxu0 0.0
    %278 = vmatprep.subr.mxu0 0.0
    %279 = vmatpush2.msra.mxu0 0.0
    %280 = vmatprep.subr.mxu0 0.0
    %281 = vmatpush2.msra.mxu0 0.0
    %282 = vmatprep.subr.mxu0 0.0
    %283 = vmatpush2.msra.mxu0 0.0
    %284 = vmatprep.subr.mxu0 0.0
    %285 = vmatpush2.msra.mxu0 0.0
    %286 = vmatprep.subr.mxu0 0.0
    %287 = vmatpush2.msra.mxu0 0.0
    %288 = vmatprep.subr.mxu0 0.0
    %289 = vmatpush2.msra.mxu0 0.0
    %290 = vmatprep.subr.mxu0 0.0
    %291 = vmatpush2.msra.mxu0 0.0
    %292 = vmatprep.subr.mxu0 0.0
    %293 = vmatpush2.msra.mxu0 0.0
    %294 = vmatprep.subr.mxu0 0.0
    %295 = vmatpush2.msra.mxu0 0.0
    %296 = vmatprep.subr.mxu0 0.0
    %297 = vmatpush2.msra.mxu0 0.0
    %298 = vmatprep.subr.mxu0 0.0
    %299 = vmatpush2.msra.mxu0 0.0
    %300 = vmatprep.subr.mxu0 0.0
    %301 = vmatpush2.msra.mxu0 0.0
    %302 = vmatprep.subr.mxu0 0.0
    %303 = vmatpush2.msra.mxu0 0.0
    %304 = vmatprep.subr.mxu0 0.0
    %305 = vmatpush2.msra.mxu0 0.0
    %306 = vmatprep.subr.mxu0 0.0
    %307 = vmatpush2.msra.mxu0 0.0
    %308 = vmatprep.mubr.f32.mxu0 0.0
    %309 = vmatmul.mubr.f32.gmra.mxu0 %v239
    %v310 = vpop.f32.mrf.mxu0
    %v311 = vadd.f32 0.0, %v310
    %v312 = vpop.f32.mrf.mxu0
    %313 = vdwg.mxu0
    %v315 = vsel %vm68, %v146, 0
    %v318 = vsel %vm72, %v235, 0
    %320 = vmatprep.subr.mxu0 0.0
    %321 = vmatpush1.msra.mxu0 0.0
    %322 = vmatprep.subr.mxu0 0.0
    %323 = vmatpush1.msra.mxu0 0.0
    %324 = vmatprep.subr.mxu0 0.0
    %325 = vmatpush1.msra.mxu0 0.0
    %326 = vmatprep.subr.mxu0 0.0
    %327 = vmatpush1.msra.mxu0 0.0
    %328 = vmatprep.subr.mxu0 0.0
    %329 = vmatpush1.msra.mxu0 0.0
    %330 = vmatprep.subr.mxu0 0.0
    %331 = vmatpush1.msra.mxu0 0.0
    %332 = vmatprep.subr.mxu0 0.0
    %333 = vmatpush1.msra.mxu0 0.0
    %334 = vmatprep.subr.mxu0 0.0
    %335 = vmatpush1.msra.mxu0 0.0
    %336 = vmatprep.subr.mxu0 0.0
    %337 = vmatpush1.msra.mxu0 0.0
    %338 = vmatprep.subr.mxu0 0.0
    %339 = vmatpush1.msra.mxu0 0.0
    %340 = vmatprep.subr.mxu0 0.0
    %341 = vmatpush1.msra.mxu0 0.0
    %342 = vmatprep.subr.mxu0 0.0
    %343 = vmatpush1.msra.mxu0 0.0
    %344 = vmatprep.subr.mxu0 0.0
    %345 = vmatpush1.msra.mxu0 0.0
    %346 = vmatprep.subr.mxu0 0.0
    %347 = vmatpush1.msra.mxu0 0.0
    %348 = vmatprep.subr.mxu0 0.0
    %349 = vmatpush1.msra.mxu0 %v318
    %350 = vmatprep.subr.mxu0 0.0
    %351 = vmatpush1.msra.mxu0 %v234
    %352 = vmatprep.subr.mxu0 0.0
    %353 = vmatpush2.msra.mxu0 0.0
    %354 = vmatprep.subr.mxu0 0.0
    %355 = vmatpush2.msra.mxu0 0.0
    %356 = vmatprep.subr.mxu0 0.0
    %357 = vmatpush2.msra.mxu0 0.0
    %358 = vmatprep.subr.mxu0 0.0
    %359 = vmatpush2.msra.mxu0 0.0
    %360 = vmatprep.subr.mxu0 0.0
    %361 = vmatpush2.msra.mxu0 0.0
    %362 = vmatprep.subr.mxu0 0.0
    %363 = vmatpush2.msra.mxu0 0.0
    %364 = vmatprep.subr.mxu0 0.0
    %365 = vmatpush2.msra.mxu0 0.0
    %366 = vmatprep.subr.mxu0 0.0
    %367 = vmatpush2.msra.mxu0 0.0
    %368 = vmatprep.subr.mxu0 0.0
    %369 = vmatpush2.msra.mxu0 0.0
    %370 = vmatprep.subr.mxu0 0.0
    %371 = vmatpush2.msra.mxu0 0.0
    %372 = vmatprep.subr.mxu0 0.0
    %373 = vmatpush2.msra.mxu0 0.0
    %374 = vmatprep.subr.mxu0 0.0
    %375 = vmatpush2.msra.mxu0 0.0
    %376 = vmatprep.subr.mxu0 0.0
    %377 = vmatpush2.msra.mxu0 0.0
    %378 = vmatprep.subr.mxu0 0.0
    %379 = vmatpush2.msra.mxu0 0.0
    %380 = vmatprep.subr.mxu0 0.0
    %381 = vmatpush2.msra.mxu0 0.0
    %382 = vmatprep.subr.mxu0 0.0
    %383 = vmatpush2.msra.mxu0 0.0
    %384 = vmatprep.mubr.f32.mxu0 0.0
    %385 = vmatmul.mubr.f32.gmra.mxu0 %v315
    %v386 = vpop.f32.mrf.mxu0
    %v387 = vadd.f32 %v311, %v386
    %v388 = vpop.f32.mrf.mxu0
    %389 = vdwg.mxu0
    %v390 = vld [vmem:[#allocation2] sm:$0x1]
    %v392 = vlaneseq
    %v393 = vshrl.u32 %v392, 7
    %v394 = vsub.s32 0, %v393
    %v395 = vrot.slane %v390, %v394
    %v397 = vadd.f32 %v387, %v395
    %vm398 = vcmask 7168
    %399 = vst.msk [vmem:[%s9] sm:$0xff] %vm398, %v397
    // Predicated region
    $region46: #{tpu_custom_call.1} parent=1 // pred_check
      _
    $region47: #{tpu_custom_call.1} parent=1 // pred_check_branch
      %401 = sbr.rel (0) target = $region49
    $region48: #{tpu_custom_call.1} parent=1 // pred_region
      _
    $region49: #{tpu_custom_call.1} parent=1 // pred_fallthru
      _
    // Predicated region
    $region50: #{tpu_custom_call.1} parent=1 // pred_check
      _
    $region51: #{tpu_custom_call.1} parent=1 // pred_check_branch
      %403 = sbr.rel (0) target = $region53
    $region52: #{tpu_custom_call.1} parent=1 // pred_region
      _
    $region53: #{tpu_custom_call.1} parent=1 // pred_fallthru
      _
    %404 = vsyncpa [#allocation4], 1
    %405 = vsyncpa [#allocation6], 1

</llo_original>
